<compile_context>
chip_gen: v6e
topology: v6e:2x2x1
jax: 0.10.0
libtpu: 0.0.40
codegen_flags: <defaults>
</compile_context>

<pallas_src>
import functools

import jax
import jax.numpy as jnp
from jax.experimental import pallas as pl
from jax.experimental.pallas import tpu as pltpu

HIDDEN = 256
LANE = 128


def _round_up(x, m):
    return ((x + m - 1) // m) * m


def fc_output_kernel(seed_ref, x_ref, w2_ref, b2_ref, w3_ref, b3_ref, out_ref, *,
                     class_count, tile_b):
    # ---- fc2: (TB, 256) @ (256, 256) on the MXU, bf16 operands, f32 accumulation ----
    x = x_ref[...]
    if x.dtype != jnp.bfloat16:
        x = x.astype(jnp.bfloat16)
    h = jnp.dot(x, w2_ref[...], preferred_element_type=jnp.float32)
    h = h + b2_ref[...]

    # ---- relu (f32, VPU) ----
    h = jnp.maximum(h, 0.0)

    # ---- dropout, p = 0.5, training mode (F.dropout default) ----
    # Counter-based hash PRNG: no HBM randomness stream, no TPU-only PRNG primitives.
    # Global (row, col) position + seed -> mixed 32-bit word; top bit ~ Bernoulli(0.5).
    row = jax.lax.broadcasted_iota(jnp.int32, h.shape, 0).astype(jnp.uint32)
    col = jax.lax.broadcasted_iota(jnp.int32, h.shape, 1).astype(jnp.uint32)
    gid = row + pl.program_id(0).astype(jnp.uint32) * jnp.uint32(tile_b)
    seed = seed_ref[0].astype(jnp.uint32)
    v = gid * jnp.uint32(0x9E3779B9) + col * jnp.uint32(0x85EBCA6B) + seed
    v = v ^ (v >> 16)
    v = v * jnp.uint32(0x7FEB352D)
    v = v ^ (v >> 15)
    v = v * jnp.uint32(0x846CA68B)
    v = v ^ (v >> 16)
    keep = (v >> 31) == 0
    # 1/(1-p) = 2 scale is pre-folded into w3 on the host, so this is a plain select.
    h = jnp.where(keep, h, 0.0)

    # ---- fc3: (TB, 256) @ (256, C_pad), class axis padded to a 128-lane multiple ----
    logits = jnp.dot(h.astype(jnp.bfloat16), w3_ref[...],
                     preferred_element_type=jnp.float32)
    logits = logits + b3_ref[...]

    # mask padded class columns out of the softmax normalization
    cls = jax.lax.broadcasted_iota(jnp.int32, logits.shape, 1)
    logits = jnp.where(cls < class_count, logits, -jnp.inf)

    # ---- log_softmax over the class axis ----
    m = jnp.max(logits, axis=-1, keepdims=True)
    shifted = logits - m
    lse = jnp.log(jnp.sum(jnp.exp(shifted), axis=-1, keepdims=True))
    out_ref[...] = (shifted - lse).astype(out_ref.dtype)


def fc_output_model(x, w2, b2, w3, b3, dropout_key, *, tile_b=1024,
                    out_dtype=jnp.float32):
    """x: (B, 256) f32 or bf16; w2: (256, 256); b2: (256,); w3: (256, C); b3: (C,).
    Returns (B, C) log-probabilities (out_dtype, default f32; bf16 halves output HBM
    traffic for tiny class counts if downstream tolerates it)."""
    B, D = x.shape
    assert D == HIDDEN
    C = w3.shape[1]
    C_pad = _round_up(C, LANE)

    # lane-dense class axis: zero-pad fc3 weight/bias to a multiple of 128.
    # Dropout 1/(1-p)=2 scale is folded into w3 here (commutes through relu & the mask).
    w3p = jnp.zeros((D, C_pad), jnp.float32).at[:, :C].set(w3 * 2.0)
    b3p = jnp.zeros((1, C_pad), jnp.float32).at[:, :C].set(b3.reshape(1, -1))

    # bf16 MXU operands; biases stay f32
    w2b = w2.astype(jnp.bfloat16)
    w3b = w3p.astype(jnp.bfloat16)
    b2r = b2.reshape(1, -1).astype(jnp.float32)

    # batch tiling: sublane-aligned tile; pad B so the grid divides evenly.
    b_aligned = _round_up(B, 8)
    tb = min(tile_b, b_aligned)
    # v7x megacore: if the whole batch fits one tile but can be split, use >= 2 grid
    # steps on the "parallel" axis so the second TensorCore isn't idle (free on v5e/v6e).
    if tb == b_aligned and b_aligned >= 16:
        tb = _round_up((b_aligned + 1) // 2, 8)
    b_pad = _round_up(B, tb)
    xp = x if b_pad == B else jnp.zeros((b_pad, D), x.dtype).at[:B].set(x)

    # 32-bit seed for the in-kernel counter-based dropout hash (SMEM scalar prefetch).
    seed = jax.random.randint(dropout_key, (1,), 0, jnp.iinfo(jnp.int32).max,
                              dtype=jnp.int32)

    grid = (b_pad // tb,)
    kernel = functools.partial(fc_output_kernel, class_count=C, tile_b=tb)

    # VMEM footprint at tb=1024: ~2 MB streamed x (double-buffered) + ~1 MB output +
    # ~0.4 MB resident weights -> far inside every generation's scoped default, so no
    # explicit vmem_limit_bytes is needed.  (Weights could be single-buffered via
    # pipeline_mode=pl.Buffered(1) for ~200 KB extra headroom if ever required.)
    out = pl.pallas_call(
        kernel,
        out_shape=jax.ShapeDtypeStruct((b_pad, C_pad), out_dtype),
        grid_spec=pltpu.PrefetchScalarGridSpec(
            num_scalar_prefetch=1,
            grid=grid,
            in_specs=[
                pl.BlockSpec((tb, D), lambda i, seed: (i, 0)),      # x tile (streamed)
                pl.BlockSpec((D, D), lambda i, seed: (0, 0)),       # w2 (VMEM-resident)
                pl.BlockSpec((1, D), lambda i, seed: (0, 0)),       # b2
                pl.BlockSpec((D, C_pad), lambda i, seed: (0, 0)),   # w3 (VMEM-resident)
                pl.BlockSpec((1, C_pad), lambda i, seed: (0, 0)),   # b3
            ],
            out_specs=pl.BlockSpec((tb, C_pad), lambda i, seed: (i, 0)),
        ),
        compiler_params=pltpu.CompilerParams(
            dimension_semantics=("parallel",)),
    )(seed, xp, w2b, b2r, w3b, b3p)

    return out[:B, :C]


def init_params(key, class_count):
    """Deterministic init mimicking nn.Linear defaults (uniform +/- 1/sqrt(fan_in))."""
    k1, k2, k3, k4 = jax.random.split(key, 4)
    bound = 1.0 / jnp.sqrt(jnp.float32(HIDDEN))
    w2 = jax.random.uniform(k1, (HIDDEN, HIDDEN), jnp.float32, -bound, bound)
    b2 = jax.random.uniform(k2, (HIDDEN,), jnp.float32, -bound, bound)
    w3 = jax.random.uniform(k3, (HIDDEN, class_count), jnp.float32, -bound, bound)
    b3 = jax.random.uniform(k4, (class_count,), jnp.float32, -bound, bound)
    return w2, b2, w3, b3


if __name__ == "__main__":
    key = jax.random.PRNGKey(0)
    kx, kp, kd = jax.random.split(key, 3)

    B = 8             # batch (small example; kernel tiles/pads for larger B)
    CLASS_COUNT = 10  # e.g. 10-way classification head

    x = jax.random.normal(kx, (B, HIDDEN), jnp.float32)
    w2, b2, w3, b3 = init_params(kp, CLASS_COUNT)

    out = fc_output_model(x, w2, b2, w3, b3, kd)
    out = jax.block_until_ready(out)

    assert out.shape == (B, CLASS_COUNT)
    assert bool(jnp.all(jnp.isfinite(out)))
    # log_softmax rows should sum (in prob space) to ~1
    assert jnp.allclose(jnp.exp(out).sum(axis=-1), 1.0, atol=1e-3)
    print("KERNEL_OK")
</pallas_src>

<mosaic_0001>
module attributes {stable_mosaic.version = 11 : i64} {
  func.func @fc_output_kernel(%arg0: i32, %arg1: memref<1xi32, #tpu.memory_space<smem>>, %arg2: memref<8x256xf32, #tpu.memory_space<vmem>>, %arg3: memref<256x256xbf16, #tpu.memory_space<vmem>>, %arg4: memref<1x256xf32, #tpu.memory_space<vmem>>, %arg5: memref<256x128xbf16, #tpu.memory_space<vmem>>, %arg6: memref<1x128xf32, #tpu.memory_space<vmem>>, %arg7: memref<8x128xf32, #tpu.memory_space<vmem>>) attributes {dimension_semantics = [#tpu.dimension_semantics<parallel>], iteration_bounds = array<i64: 1>, scalar_prefetch = 1 : i64, scratch_operands = 0 : i64, tpu.core_type = #tpu.core_type<tc>, window_params = [{transform_indices = @transform_0, window_bounds = array<i64: 8, 256>}, {pipeline_mode = #tpu.pipeline_mode<synchronous>, transform_indices = @transform_1, window_bounds = array<i64: 256, 256>}, {pipeline_mode = #tpu.pipeline_mode<synchronous>, transform_indices = @transform_2, window_bounds = array<i64: 1, 256>}, {pipeline_mode = #tpu.pipeline_mode<synchronous>, transform_indices = @transform_3, window_bounds = array<i64: 256, 128>}, {pipeline_mode = #tpu.pipeline_mode<synchronous>, transform_indices = @transform_4, window_bounds = array<i64: 1, 128>}, {transform_indices = @transform_5, window_bounds = array<i64: 8, 128>}]} {
    %c0 = arith.constant 0 : index
    %c0_0 = arith.constant 0 : index
    %0 = vector.load %arg2[%c0, %c0_0] : memref<8x256xf32, #tpu.memory_space<vmem>>, vector<8x256xf32>
    %1 = arith.truncf %0 : vector<8x256xf32> to vector<8x256xbf16>
    %c0_1 = arith.constant 0 : index
    %c0_2 = arith.constant 0 : index
    %2 = vector.load %arg3[%c0_1, %c0_2] : memref<256x256xbf16, #tpu.memory_space<vmem>>, vector<256x256xbf16>
    %cst = arith.constant dense<0.000000e+00> : vector<8x256xf32>
    %3 = tpu.matmul %1, %2, %cst {dimension_numbers = #tpu.dot_dimension_numbers<[1], [0], [0], [1], [0, 0, 1, 1], [], []>} : vector<8x256xbf16>, vector<256x256xbf16>, vector<8x256xf32> -> vector<8x256xf32>
    %c0_3 = arith.constant 0 : index
    %c0_4 = arith.constant 0 : index
    %4 = vector.load %arg4[%c0_3, %c0_4] : memref<1x256xf32, #tpu.memory_space<vmem>>, vector<1x256xf32>
    %5 = vector.broadcast %4 : vector<1x256xf32> to vector<8x256xf32>
    %6 = arith.addf %3, %5 : vector<8x256xf32>
    %cst_5 = arith.constant 0.000000e+00 : f32
    %7 = vector.broadcast %cst_5 : f32 to vector<8x256xf32>
    %8 = arith.maximumf %6, %7 : vector<8x256xf32>
    %9 = tpu.iota {dimensions = array<i32: 0>} : vector<8x256xi32>
    %10 = tpu.iota {dimensions = array<i32: 1>} : vector<8x256xi32>
    %c8_i32 = arith.constant 8 : i32
    %11 = arith.muli %arg0, %c8_i32 : i32
    %12 = vector.broadcast %11 : i32 to vector<8x256xi32>
    %13 = arith.addi %9, %12 : vector<8x256xi32>
    %c0_6 = arith.constant 0 : index
    %14 = memref.load %arg1[%c0_6] : memref<1xi32, #tpu.memory_space<smem>>
    %c-1640531527_i32 = arith.constant -1640531527 : i32
    %15 = vector.broadcast %c-1640531527_i32 : i32 to vector<8x256xi32>
    %16 = arith.muli %13, %15 : vector<8x256xi32>
    %c-2048144789_i32 = arith.constant -2048144789 : i32
    %17 = vector.broadcast %c-2048144789_i32 : i32 to vector<8x256xi32>
    %18 = arith.muli %10, %17 : vector<8x256xi32>
    %19 = arith.addi %16, %18 : vector<8x256xi32>
    %20 = vector.broadcast %14 : i32 to vector<8x256xi32>
    %21 = arith.addi %19, %20 : vector<8x256xi32>
    %c16_i32 = arith.constant 16 : i32
    %22 = vector.broadcast %c16_i32 : i32 to vector<8x256xi32>
    %23 = arith.shrui %21, %22 : vector<8x256xi32>
    %24 = arith.xori %21, %23 : vector<8x256xi32>
    %c2146121005_i32 = arith.constant 2146121005 : i32
    %25 = vector.broadcast %c2146121005_i32 : i32 to vector<8x256xi32>
    %26 = arith.muli %24, %25 : vector<8x256xi32>
    %c15_i32 = arith.constant 15 : i32
    %27 = vector.broadcast %c15_i32 : i32 to vector<8x256xi32>
    %28 = arith.shrui %26, %27 : vector<8x256xi32>
    %29 = arith.xori %26, %28 : vector<8x256xi32>
    %c-2073254261_i32 = arith.constant -2073254261 : i32
    %30 = vector.broadcast %c-2073254261_i32 : i32 to vector<8x256xi32>
    %31 = arith.muli %29, %30 : vector<8x256xi32>
    %c16_i32_7 = arith.constant 16 : i32
    %32 = vector.broadcast %c16_i32_7 : i32 to vector<8x256xi32>
    %33 = arith.shrui %31, %32 : vector<8x256xi32>
    %34 = arith.xori %31, %33 : vector<8x256xi32>
    %c31_i32 = arith.constant 31 : i32
    %35 = vector.broadcast %c31_i32 : i32 to vector<8x256xi32>
    %36 = arith.shrui %34, %35 : vector<8x256xi32>
    %c0_i32 = arith.constant 0 : i32
    %37 = vector.broadcast %c0_i32 : i32 to vector<8x256xi32>
    %38 = arith.cmpi eq, %36, %37 : vector<8x256xi32>
    %cst_8 = arith.constant 0.000000e+00 : f32
    %39 = vector.broadcast %cst_8 : f32 to vector<8x256xf32>
    %40 = arith.select %38, %8, %39 : vector<8x256xi1>, vector<8x256xf32>
    %41 = arith.truncf %40 : vector<8x256xf32> to vector<8x256xbf16>
    %c0_9 = arith.constant 0 : index
    %c0_10 = arith.constant 0 : index
    %42 = vector.load %arg5[%c0_9, %c0_10] : memref<256x128xbf16, #tpu.memory_space<vmem>>, vector<256x128xbf16>
    %cst_11 = arith.constant dense<0.000000e+00> : vector<8x128xf32>
    %43 = tpu.matmul %41, %42, %cst_11 {dimension_numbers = #tpu.dot_dimension_numbers<[1], [0], [0], [1], [0, 0, 1, 1], [], []>} : vector<8x256xbf16>, vector<256x128xbf16>, vector<8x128xf32> -> vector<8x128xf32>
    %c0_12 = arith.constant 0 : index
    %c0_13 = arith.constant 0 : index
    %44 = vector.load %arg6[%c0_12, %c0_13] : memref<1x128xf32, #tpu.memory_space<vmem>>, vector<1x128xf32>
    %45 = vector.broadcast %44 : vector<1x128xf32> to vector<8x128xf32>
    %46 = arith.addf %43, %45 : vector<8x128xf32>
    %47 = tpu.iota {dimensions = array<i32: 1>} : vector<8x128xi32>
    %c10_i32 = arith.constant 10 : i32
    %48 = vector.broadcast %c10_i32 : i32 to vector<8x128xi32>
    %49 = arith.cmpi slt, %47, %48 : vector<8x128xi32>
    %cst_14 = arith.constant 0xFF800000 : f32
    %50 = vector.broadcast %cst_14 : f32 to vector<8x128xf32>
    %51 = arith.select %49, %46, %50 : vector<8x128xi1>, vector<8x128xf32>
    %cst_15 = arith.constant dense<0xFF800000> : vector<8xf32>
    %52 = vector.multi_reduction <maximumf>, %51, %cst_15 [1] : vector<8x128xf32> to vector<8xf32>
    %53 = vector.shape_cast %52 : vector<8xf32> to vector<8x1xf32>
    %54 = vector.broadcast %53 : vector<8x1xf32> to vector<8x128xf32>
    %55 = arith.subf %51, %54 : vector<8x128xf32>
    %56 = math.exp %55 : vector<8x128xf32>
    %cst_16 = arith.constant dense<0.000000e+00> : vector<8xf32>
    %57 = vector.multi_reduction <add>, %56, %cst_16 [1] : vector<8x128xf32> to vector<8xf32>
    %58 = vector.shape_cast %57 : vector<8xf32> to vector<8x1xf32>
    %59 = math.log %58 : vector<8x1xf32>
    %60 = vector.broadcast %59 : vector<8x1xf32> to vector<8x128xf32>
    %61 = arith.subf %55, %60 : vector<8x128xf32>
    %c0_17 = arith.constant 0 : index
    %c0_18 = arith.constant 0 : index
    %62 = vector.load %arg7[%c0_17, %c0_18] : memref<8x128xf32, #tpu.memory_space<vmem>>, vector<8x128xf32>
    tpu.vector_store %arg7[%c0_17, %c0_18], %61 {strides = array<i32>} : memref<8x128xf32, #tpu.memory_space<vmem>>, vector<8x128xf32>,
    return
  }
  func.func @transform_0(%arg0: i32, %arg1: memref<1xi32, #tpu.memory_space<smem>>) -> (i32, i32) {
    %c0_i32 = arith.constant 0 : i32
    %c0_i32_0 = arith.constant 0 : i32
    return %arg0, %c0_i32 : i32, i32
  }
  func.func @transform_1(%arg0: i32, %arg1: memref<1xi32, #tpu.memory_space<smem>>) -> (i32, i32) {
    %c0_i32 = arith.constant 0 : i32
    %c0_i32_0 = arith.constant 0 : i32
    %c0_i32_1 = arith.constant 0 : i32
    return %c0_i32, %c0_i32_0 : i32, i32
  }
  func.func @transform_2(%arg0: i32, %arg1: memref<1xi32, #tpu.memory_space<smem>>) -> (i32, i32) {
    %c0_i32 = arith.constant 0 : i32
    %c0_i32_0 = arith.constant 0 : i32
    %c0_i32_1 = arith.constant 0 : i32
    return %c0_i32, %c0_i32_0 : i32, i32
  }
  func.func @transform_3(%arg0: i32, %arg1: memref<1xi32, #tpu.memory_space<smem>>) -> (i32, i32) {
    %c0_i32 = arith.constant 0 : i32
    %c0_i32_0 = arith.constant 0 : i32
    %c0_i32_1 = arith.constant 0 : i32
    return %c0_i32, %c0_i32_0 : i32, i32
  }
  func.func @transform_4(%arg0: i32, %arg1: memref<1xi32, #tpu.memory_space<smem>>) -> (i32, i32) {
    %c0_i32 = arith.constant 0 : i32
    %c0_i32_0 = arith.constant 0 : i32
    %c0_i32_1 = arith.constant 0 : i32
    return %c0_i32, %c0_i32_0 : i32, i32
  }
  func.func @transform_5(%arg0: i32, %arg1: memref<1xi32, #tpu.memory_space<smem>>) -> (i32, i32) {
    %c0_i32 = arith.constant 0 : i32
    %c0_i32_0 = arith.constant 0 : i32
    return %arg0, %c0_i32 : i32, i32
  }
}

</mosaic_0001>

<llo_original>
// kernel: tpu_custom_call.1
$region0: #{tpu_custom_call.1}
  #allocation0 [shape = 'u32[]', space=smem, size = 0x4, offset = 0x4, fixed_abs, tag = 'smem constant byte address 0x4 - core index']
  #allocation1 [shape = 'u32[144,128]{1,0:T(1,128)}', space=vmem, size = 0x12000, scoped, tag = 'internal scratch']
  #allocation2 [shape = 's32[1]{0}', space=sflag, size = 0x4, scoped, tag = 'scoped memory for tpu_custom_call.1']
  #allocation3 [shape = 's32[1]{0:T(128)S(6)}', space=smem, size = 0x200, scoped, tag = 'prefetched SMEM operand 0']
  %s0 = inlined_call_operand.<no memory space> [shape: s32[1], index: 0, kind: input, shape index: {}]
  %s1 = inlined_call_operand.hbm [shape: f32[8,256], index: 1, kind: input, shape index: {}]
  %s2 = inlined_call_operand.hbm [shape: bf16[256,256], index: 2, kind: input, shape index: {}]
  %s3 = inlined_call_operand.vmem [shape: f32[1,256], index: 3, kind: input, shape index: {}]
  %s4 = inlined_call_operand.hbm [shape: bf16[256,128], index: 4, kind: input, shape index: {}]
  %s5 = inlined_call_operand.vmem [shape: f32[1,128], index: 5, kind: input, shape index: {}]
  %s6 = inlined_call_operand.hbm [shape: f32[8,128], index: 6, kind: output, shape index: {}]
  %s7 = sld [smem:[#allocation0]]
  $region42: #{tpu_custom_call.1} parent=0
    _
  %s9 = ssub.s32 1, %s7
  %s10 = scalar_select 0, %s9, %s7
  %11 = sst [smem:[#allocation3]] %s0
  $region1: #{tpu_custom_call.1} parent=0
    #allocation4 [shape = 'u8[8192]{0}', space=vmem, size = 0x2000, scoped, tag = 'input window, operand 1, single buffered']
    #allocation5 [shape = 's32[1]{0}', space=sflag, size = 0x4, scoped, tag = 'scoped memory for tpu_custom_call.1']
    #allocation6 [shape = 's32[1]{0}', space=sflag, size = 0x4, scoped, tag = 'scoped memory for tpu_custom_call.1']
    #allocation7 [shape = 'u8[131072]{0}', space=vmem, size = 0x20000, scoped, tag = 'input window, operand 2, single buffered']
    #allocation8 [shape = 's32[1]{0}', space=sflag, size = 0x4, scoped, tag = 'scoped memory for tpu_custom_call.1']
    #allocation9 [shape = 'u8[65536]{0}', space=vmem, size = 0x10000, scoped, tag = 'input window, operand 4, single buffered']
    #allocation10 [shape = 'u8[4096]{0}', space=vmem, size = 0x1000, scoped, tag = 'output window, operand 0, single buffered']
    %12 = vsyncpa [#allocation5], 0
    %13 = vsyncpa [#allocation8], 0
    %14 = vsyncpa [#allocation6], 0
    // Predicated region
    $region2: #{tpu_custom_call.1} parent=1 // pred_check
      _
    $region3: #{tpu_custom_call.1} parent=1 // pred_check_branch
      %16 = sbr.rel (0) target = $region5
    $region4: #{tpu_custom_call.1} parent=1 // pred_region
      %s18 = ssub.s32 256, 256
      %19 = vsyncadd [#allocation5], %s18
      %s21 = sshll.u32 [#allocation4], 4
      %s22 = int_to_ptr.vmem [resolvable:$true] %s21
      %24 = dma.hbm_to_vmem [thread:$0]  %s1, 256, %s22, [#allocation5]
    $region5: #{tpu_custom_call.1} parent=1 // pred_fallthru
      _
    // Predicated region
    $region6: #{tpu_custom_call.1} parent=1 // pred_check
      _
    $region7: #{tpu_custom_call.1} parent=1 // pred_check_branch
      %26 = sbr.rel (0) target = $region9
    $region8: #{tpu_custom_call.1} parent=1 // pred_region
      %s28 = ssub.s32 4096, 4096
      %29 = vsyncadd [#allocation8], %s28
      %s30 = sshll.u32 [#allocation7], 4
      %s31 = int_to_ptr.vmem [resolvable:$true] %s30
      %36 = dma.hbm_to_vmem [thread:$0]  %s2, 4096, %s31, [#allocation8], 128, 128, 8
    $region9: #{tpu_custom_call.1} parent=1 // pred_fallthru
      _
    // Predicated region
    $region10: #{tpu_custom_call.1} parent=1 // pred_check
      _
    $region11: #{tpu_custom_call.1} parent=1 // pred_check_branch
      %38 = sbr.rel (0) target = $region13
    $region12: #{tpu_custom_call.1} parent=1 // pred_region
      _
    $region13: #{tpu_custom_call.1} parent=1 // pred_fallthru
      _
    // Predicated region
    $region14: #{tpu_custom_call.1} parent=1 // pred_check
      _
    $region15: #{tpu_custom_call.1} parent=1 // pred_check_branch
      %40 = sbr.rel (0) target = $region17
    $region16: #{tpu_custom_call.1} parent=1 // pred_region
      %s42 = ssub.s32 2048, 2048
      %43 = vsyncadd [#allocation8], %s42
      %s44 = sshll.u32 [#allocation9], 4
      %s45 = int_to_ptr.vmem [resolvable:$true] %s44
      %50 = dma.hbm_to_vmem [thread:$0]  %s4, 2048, %s45, [#allocation8], 64, 64, 4
    $region17: #{tpu_custom_call.1} parent=1 // pred_fallthru
      _
    // Predicated region
    $region18: #{tpu_custom_call.1} parent=1 // pred_check
      _
    $region19: #{tpu_custom_call.1} parent=1 // pred_check_branch
      %52 = sbr.rel (0) target = $region21
    $region20: #{tpu_custom_call.1} parent=1 // pred_region
      _
    $region21: #{tpu_custom_call.1} parent=1 // pred_fallthru
      _
    // Predicated region
    $region22: #{tpu_custom_call.1} parent=1 // pred_check
      _
    $region23: #{tpu_custom_call.1} parent=1 // pred_check_branch
      %54 = sbr.rel (0) target = $region25
    $region24: #{tpu_custom_call.1} parent=1 // pred_region
      %55 = dma.done [#allocation5], 256
    $region25: #{tpu_custom_call.1} parent=1 // pred_fallthru
      _
    // Predicated region
    $region26: #{tpu_custom_call.1} parent=1 // pred_check
      _
    $region27: #{tpu_custom_call.1} parent=1 // pred_check_branch
      %57 = sbr.rel (0) target = $region29
    $region28: #{tpu_custom_call.1} parent=1 // pred_region
      %58 = dma.done [#allocation8], 4096
    $region29: #{tpu_custom_call.1} parent=1 // pred_fallthru
      _
    // Predicated region
    $region30: #{tpu_custom_call.1} parent=1 // pred_check
      _
    $region31: #{tpu_custom_call.1} parent=1 // pred_check_branch
      %60 = sbr.rel (0) target = $region33
    $region32: #{tpu_custom_call.1} parent=1 // pred_region
      %61 = dma.done [#allocation8], 2048
    $region33: #{tpu_custom_call.1} parent=1 // pred_fallthru
      _
    %v63 = vld [vmem:[#allocation4] sm:$0xff]
    %v64 = vld [vmem:[#allocation4 + $0x8] sm:$0xff]
    %v65 = vpack.c.bf16 %v63, %v63
    %v66 = vpack.c.bf16 %v64, %v64
    %v67 = vld [vmem:[#allocation7] sm:$0xff]
    %v68 = vld [vmem:[#allocation7 + $0x8] sm:$0xff]
    %v69 = vld [vmem:[#allocation7 + $0x10] sm:$0xff]
    %v70 = vld [vmem:[#allocation7 + $0x18] sm:$0xff]
    %v71 = vld [vmem:[#allocation7 + $0x20] sm:$0xff]
    %v72 = vld [vmem:[#allocation7 + $0x28] sm:$0xff]
    %v73 = vld [vmem:[#allocation7 + $0x30] sm:$0xff]
    %v74 = vld [vmem:[#allocation7 + $0x38] sm:$0xff]
    %v75 = vld [vmem:[#allocation7 + $0x40] sm:$0xff]
    %v76 = vld [vmem:[#allocation7 + $0x48] sm:$0xff]
    %v77 = vld [vmem:[#allocation7 + $0x50] sm:$0xff]
    %v78 = vld [vmem:[#allocation7 + $0x58] sm:$0xff]
    %v79 = vld [vmem:[#allocation7 + $0x60] sm:$0xff]
    %v80 = vld [vmem:[#allocation7 + $0x68] sm:$0xff]
    %v81 = vld [vmem:[#allocation7 + $0x70] sm:$0xff]
    %v82 = vld [vmem:[#allocation7 + $0x78] sm:$0xff]
    %v83 = vld [vmem:[#allocation7 + $0x80] sm:$0xff]
    %v84 = vld [vmem:[#allocation7 + $0x88] sm:$0xff]
    %v85 = vld [vmem:[#allocation7 + $0x90] sm:$0xff]
    %v86 = vld [vmem:[#allocation7 + $0x98] sm:$0xff]
    %v87 = vld [vmem:[#allocation7 + $0xa0] sm:$0xff]
    %v88 = vld [vmem:[#allocation7 + $0xa8] sm:$0xff]
    %v89 = vld [vmem:[#allocation7 + $0xb0] sm:$0xff]
    %v90 = vld [vmem:[#allocation7 + $0xb8] sm:$0xff]
    %v91 = vld [vmem:[#allocation7 + $0xc0] sm:$0xff]
    %v92 = vld [vmem:[#allocation7 + $0xc8] sm:$0xff]
    %v93 = vld [vmem:[#allocation7 + $0xd0] sm:$0xff]
    %v94 = vld [vmem:[#allocation7 + $0xd8] sm:$0xff]
    %v95 = vld [vmem:[#allocation7 + $0xe0] sm:$0xff]
    %v96 = vld [vmem:[#allocation7 + $0xe8] sm:$0xff]
    %v97 = vld [vmem:[#allocation7 + $0xf0] sm:$0xff]
    %v98 = vld [vmem:[#allocation7 + $0xf8] sm:$0xff]
    %v99 = vld [vmem:[%s3] sm:$0x3]
    %v101 = vlaneseq
    %v102 = vshrl.u32 %v101, 7
    %v103 = vsub.s32 0, %v102
    %v104 = vrot.slane %v99, %v103
    %v105 = vlaneseq
    %v106 = vshrl.u32 %v105, 7
    %v107 = vsub.s32 1, %v106
    %v108 = vrot.slane %v99, %v107
    %v143 = vunpack.c.l.b16 %v67
    %v144 = vunpack.c.h.b16 %v67
    %v145 = vunpack.c.l.b16 %v68
    %v146 = vunpack.c.h.b16 %v68
    %v147 = vunpack.c.l.b16 %v69
    %v148 = vunpack.c.h.b16 %v69
    %v149 = vunpack.c.l.b16 %v70
    %v150 = vunpack.c.h.b16 %v70
    %v151 = vunpack.c.l.b16 %v71
    %v152 = vunpack.c.h.b16 %v71
    %v153 = vunpack.c.l.b16 %v72
    %v154 = vunpack.c.h.b16 %v72
    %v155 = vunpack.c.l.b16 %v73
    %v156 = vunpack.c.h.b16 %v73
    %v157 = vunpack.c.l.b16 %v74
    %v158 = vunpack.c.h.b16 %v74
    %v159 = vunpack.c.l.b16 %v75
    %v160 = vunpack.c.h.b16 %v75
    %v161 = vunpack.c.l.b16 %v76
    %v162 = vunpack.c.h.b16 %v76
    %v163 = vunpack.c.l.b16 %v77
    %v164 = vunpack.c.h.b16 %v77
    %v165 = vunpack.c.l.b16 %v78
    %v166 = vunpack.c.h.b16 %v78
    %v167 = vunpack.c.l.b16 %v79
    %v168 = vunpack.c.h.b16 %v79
    %v169 = vunpack.c.l.b16 %v80
    %v170 = vunpack.c.h.b16 %v80
    %v171 = vunpack.c.l.b16 %v81
    %v172 = vunpack.c.h.b16 %v81
    %v173 = vunpack.c.l.b16 %v82
    %v174 = vunpack.c.h.b16 %v82
    %v175 = vunpack.c.l.b16 %v83
    %v176 = vunpack.c.h.b16 %v83
    %v177 = vunpack.c.l.b16 %v84
    %v178 = vunpack.c.h.b16 %v84
    %v179 = vunpack.c.l.b16 %v85
    %v180 = vunpack.c.h.b16 %v85
    %v181 = vunpack.c.l.b16 %v86
    %v182 = vunpack.c.h.b16 %v86
    %v183 = vunpack.c.l.b16 %v87
    %v184 = vunpack.c.h.b16 %v87
    %v185 = vunpack.c.l.b16 %v88
    %v186 = vunpack.c.h.b16 %v88
    %v187 = vunpack.c.l.b16 %v89
    %v188 = vunpack.c.h.b16 %v89
    %v189 = vunpack.c.l.b16 %v90
    %v190 = vunpack.c.h.b16 %v90
    %v191 = vunpack.c.l.b16 %v91
    %v192 = vunpack.c.h.b16 %v91
    %v193 = vunpack.c.l.b16 %v92
    %v194 = vunpack.c.h.b16 %v92
    %v195 = vunpack.c.l.b16 %v93
    %v196 = vunpack.c.h.b16 %v93
    %v197 = vunpack.c.l.b16 %v94
    %v198 = vunpack.c.h.b16 %v94
    %v199 = vunpack.c.l.b16 %v95
    %v200 = vunpack.c.h.b16 %v95
    %v201 = vunpack.c.l.b16 %v96
    %v202 = vunpack.c.h.b16 %v96
    %v203 = vunpack.c.l.b16 %v97
    %v204 = vunpack.c.h.b16 %v97
    %v205 = vunpack.c.l.b16 %v98
    %v206 = vunpack.c.h.b16 %v98
    %v207 = vpack.c.b16 %v145, %v143
    %v208 = vpack.c.b16 %v146, %v144
    %v209 = vpack.c.b16 %v149, %v147
    %v210 = vpack.c.b16 %v150, %v148
    %v211 = vpack.c.b16 %v153, %v151
    %v212 = vpack.c.b16 %v154, %v152
    %v213 = vpack.c.b16 %v157, %v155
    %v214 = vpack.c.b16 %v158, %v156
    %v215 = vpack.c.b16 %v161, %v159
    %v216 = vpack.c.b16 %v162, %v160
    %v217 = vpack.c.b16 %v165, %v163
    %v218 = vpack.c.b16 %v166, %v164
    %v219 = vpack.c.b16 %v169, %v167
    %v220 = vpack.c.b16 %v170, %v168
    %v221 = vpack.c.b16 %v173, %v171
    %v222 = vpack.c.b16 %v174, %v172
    %v223 = vpack.c.b16 %v177, %v175
    %v224 = vpack.c.b16 %v178, %v176
    %v225 = vpack.c.b16 %v181, %v179
    %v226 = vpack.c.b16 %v182, %v180
    %v227 = vpack.c.b16 %v185, %v183
    %v228 = vpack.c.b16 %v186, %v184
    %v229 = vpack.c.b16 %v189, %v187
    %v230 = vpack.c.b16 %v190, %v188
    %v231 = vpack.c.b16 %v193, %v191
    %v232 = vpack.c.b16 %v194, %v192
    %v233 = vpack.c.b16 %v197, %v195
    %v234 = vpack.c.b16 %v198, %v196
    %v235 = vpack.c.b16 %v201, %v199
    %v236 = vpack.c.b16 %v202, %v200
    %v237 = vpack.c.b16 %v205, %v203
    %v238 = vpack.c.b16 %v206, %v204
    %271 = vmatprep.subr.bf16.mxu0 %v222
    %272 = vmatpush1.bf16.msra.mxu0 %v221
    %273 = vmatprep.subr.bf16.mxu0 %v220
    %274 = vmatpush1.bf16.msra.mxu0 %v219
    %275 = vmatprep.subr.bf16.mxu0 %v218
    %276 = vmatpush1.bf16.msra.mxu0 %v217
    %277 = vmatprep.subr.bf16.mxu0 %v216
    %278 = vmatpush1.bf16.msra.mxu0 %v215
    %279 = vmatprep.subr.bf16.mxu0 %v214
    %280 = vmatpush1.bf16.msra.mxu0 %v213
    %281 = vmatprep.subr.bf16.mxu0 %v212
    %282 = vmatpush1.bf16.msra.mxu0 %v211
    %283 = vmatprep.subr.bf16.mxu0 %v210
    %284 = vmatpush1.bf16.msra.mxu0 %v209
    %285 = vmatprep.subr.bf16.mxu0 %v208
    %286 = vmatpush1.bf16.msra.mxu0 %v207
    %287 = vmatprep.subr.bf16.mxu0 %v238
    %288 = vmatpush2.bf16.msra.mxu0 %v237
    %289 = vmatprep.subr.bf16.mxu0 %v236
    %290 = vmatpush2.bf16.msra.mxu0 %v235
    %291 = vmatprep.subr.bf16.mxu0 %v234
    %292 = vmatpush2.bf16.msra.mxu0 %v233
    %293 = vmatprep.subr.bf16.mxu0 %v232
    %294 = vmatpush2.bf16.msra.mxu0 %v231
    %295 = vmatprep.subr.bf16.mxu0 %v230
    %296 = vmatpush2.bf16.msra.mxu0 %v229
    %297 = vmatprep.subr.bf16.mxu0 %v228
    %298 = vmatpush2.bf16.msra.mxu0 %v227
    %299 = vmatprep.subr.bf16.mxu0 %v226
    %300 = vmatpush2.bf16.msra.mxu0 %v225
    %301 = vmatprep.subr.bf16.mxu0 %v224
    %302 = vmatpush2.bf16.msra.mxu0 %v223
    %303 = vmatprep.mubr.bf16.mxu0 %v66
    %304 = vmatmul.mubr.bf16.gmra.mxu0 %v65
    %v305 = vpop.f32.mrf.mxu0
    %v306 = vadd.f32 %v104, %v305
    %v307 = vpop.f32.mrf.mxu0
    %v308 = vadd.f32 %v108, %v307
    %v309 = vpop.f32.mrf.mxu0
    %v310 = vpop.f32.mrf.mxu0
    %311 = vdwg.mxu0
    %v312 = vmax.f32 %v306, 0.0
    %v313 = vmax.f32 %v308, 0.0
    %v314 = vlaneseq
    %v315 = vshrl.u32 %v314, 7
    %v316 = vlaneseq
    %v317 = vand.u32 %v316, 127
    %v318 = vadd.s32 %v317, 128
    %s319 = smul.u32 0, 8
    %v320 = vstv %s319
    %v321 = vadd.s32 %v315, %v320
    %s322 = sld [smem:[#allocation3]]
    %v323 = vmul.u32 %v321, 2654435769
    %v324 = vmul.u32 %v317, 2246822507
    %v325 = vmul.u32 %v318, 2246822507
    %v326 = vadd.s32 %v323, %v324
    %v327 = vadd.s32 %v323, %v325
    %v328 = vstv %s322
    %v329 = vadd.s32 %v326, %v328
    %v330 = vadd.s32 %v327, %v328
    %v331 = vshrl.u32 %v329, 16
    %v332 = vshrl.u32 %v330, 16
    %v333 = vxor.u32 %v329, %v331
    %v334 = vxor.u32 %v330, %v332
    %v335 = vmul.u32 %v333, 2146121005
    %v336 = vmul.u32 %v334, 2146121005
    %v337 = vshrl.u32 %v335, 15
    %v338 = vshrl.u32 %v336, 15
    %v339 = vxor.u32 %v335, %v337
    %v340 = vxor.u32 %v336, %v338
    %v341 = vmul.u32 %v339, 2221713035
    %v342 = vmul.u32 %v340, 2221713035
    %v343 = vshrl.u32 %v341, 16
    %v344 = vshrl.u32 %v342, 16
    %v345 = vxor.u32 %v341, %v343
    %v346 = vxor.u32 %v342, %v344
    %v347 = vshrl.u32 %v345, 31
    %v348 = vshrl.u32 %v346, 31
    %vm349 = vcmp.eq.s32.totalorder %v347, 0
    %vm350 = vcmp.eq.s32.totalorder %v348, 0
    %v351 = vsel %vm349, %v312, 0.0
    %v352 = vsel %vm350, %v313, 0.0
    %v353 = vpack.c.bf16 %v351, %v351
    %v354 = vpack.c.bf16 %v352, %v352
    %v355 = vld [vmem:[#allocation9] sm:$0xf]
    %v356 = vld [vmem:[#allocation9 + $0x4] sm:$0xf]
    %v357 = vld [vmem:[#allocation9 + $0x8] sm:$0xf]
    %v358 = vld [vmem:[#allocation9 + $0xc] sm:$0xf]
    %v359 = vld [vmem:[#allocation9 + $0x10] sm:$0xf]
    %v360 = vld [vmem:[#allocation9 + $0x14] sm:$0xf]
    %v361 = vld [vmem:[#allocation9 + $0x18] sm:$0xf]
    %v362 = vld [vmem:[#allocation9 + $0x1c] sm:$0xf]
    %v363 = vld [vmem:[#allocation9 + $0x20] sm:$0xf]
    %v364 = vld [vmem:[#allocation9 + $0x24] sm:$0xf]
    %v365 = vld [vmem:[#allocation9 + $0x28] sm:$0xf]
    %v366 = vld [vmem:[#allocation9 + $0x2c] sm:$0xf]
    %v367 = vld [vmem:[#allocation9 + $0x30] sm:$0xf]
    %v368 = vld [vmem:[#allocation9 + $0x34] sm:$0xf]
    %v369 = vld [vmem:[#allocation9 + $0x38] sm:$0xf]
    %v370 = vld [vmem:[#allocation9 + $0x3c] sm:$0xf]
    %v371 = vld [vmem:[#allocation9 + $0x40] sm:$0xf]
    %v372 = vld [vmem:[#allocation9 + $0x44] sm:$0xf]
    %v373 = vld [vmem:[#allocation9 + $0x48] sm:$0xf]
    %v374 = vld [vmem:[#allocation9 + $0x4c] sm:$0xf]
    %v375 = vld [vmem:[#allocation9 + $0x50] sm:$0xf]
    %v376 = vld [vmem:[#allocation9 + $0x54] sm:$0xf]
    %v377 = vld [vmem:[#allocation9 + $0x58] sm:$0xf]
    %v378 = vld [vmem:[#allocation9 + $0x5c] sm:$0xf]
    %v379 = vld [vmem:[#allocation9 + $0x60] sm:$0xf]
    %v380 = vld [vmem:[#allocation9 + $0x64] sm:$0xf]
    %v381 = vld [vmem:[#allocation9 + $0x68] sm:$0xf]
    %v382 = vld [vmem:[#allocation9 + $0x6c] sm:$0xf]
    %v383 = vld [vmem:[#allocation9 + $0x70] sm:$0xf]
    %v384 = vld [vmem:[#allocation9 + $0x74] sm:$0xf]
    %v385 = vld [vmem:[#allocation9 + $0x78] sm:$0xf]
    %v386 = vld [vmem:[#allocation9 + $0x7c] sm:$0xf]
    %v387 = vld [vmem:[%s5] sm:$0x1]
    %v389 = vlaneseq
    %v390 = vshrl.u32 %v389, 7
    %v391 = vsub.s32 0, %v390
    %v392 = vrot.slane %v387, %v391
    %v426 = vunpack.c.l.b16 %v355
    %v427 = vunpack.c.l.b16 %v356
    %v428 = vunpack.c.l.b16 %v357
    %v429 = vunpack.c.l.b16 %v358
    %v430 = vunpack.c.l.b16 %v359
    %v431 = vunpack.c.l.b16 %v360
    %v432 = vunpack.c.l.b16 %v361
    %v433 = vunpack.c.l.b16 %v362
    %v434 = vunpack.c.l.b16 %v363
    %v435 = vunpack.c.l.b16 %v364
    %v436 = vunpack.c.l.b16 %v365
    %v437 = vunpack.c.l.b16 %v366
    %v438 = vunpack.c.l.b16 %v367
    %v439 = vunpack.c.l.b16 %v368
    %v440 = vunpack.c.l.b16 %v369
    %v441 = vunpack.c.l.b16 %v370
    %v442 = vunpack.c.l.b16 %v371
    %v443 = vunpack.c.l.b16 %v372
    %v444 = vunpack.c.l.b16 %v373
    %v445 = vunpack.c.l.b16 %v374
    %v446 = vunpack.c.l.b16 %v375
    %v447 = vunpack.c.l.b16 %v376
    %v448 = vunpack.c.l.b16 %v377
    %v449 = vunpack.c.l.b16 %v378
    %v450 = vunpack.c.l.b16 %v379
    %v451 = vunpack.c.l.b16 %v380
    %v452 = vunpack.c.l.b16 %v381
    %v453 = vunpack.c.l.b16 %v382
    %v454 = vunpack.c.l.b16 %v383
    %v455 = vunpack.c.l.b16 %v384
    %v456 = vunpack.c.l.b16 %v385
    %v457 = vunpack.c.l.b16 %v386
    %v458 = vpack.c.b16 %v427, %v426
    %v459 = vpack.c.b16 %v429, %v428
    %v460 = vpack.c.b16 %v431, %v430
    %v461 = vpack.c.b16 %v433, %v432
    %v462 = vpack.c.b16 %v435, %v434
    %v463 = vpack.c.b16 %v437, %v436
    %v464 = vpack.c.b16 %v439, %v438
    %v465 = vpack.c.b16 %v441, %v440
    %v466 = vpack.c.b16 %v443, %v442
    %v467 = vpack.c.b16 %v445, %v444
    %v468 = vpack.c.b16 %v447, %v446
    %v469 = vpack.c.b16 %v449, %v448
    %v470 = vpack.c.b16 %v451, %v450
    %v471 = vpack.c.b16 %v453, %v452
    %v472 = vpack.c.b16 %v455, %v454
    %v473 = vpack.c.b16 %v457, %v456
    %490 = vmatprep.subr.bf16.mxu0 0
    %491 = vmatpush1.bf16.msra.mxu0 %v465
    %492 = vmatprep.subr.bf16.mxu0 0
    %493 = vmatpush1.bf16.msra.mxu0 %v464
    %494 = vmatprep.subr.bf16.mxu0 0
    %495 = vmatpush1.bf16.msra.mxu0 %v463
    %496 = vmatprep.subr.bf16.mxu0 0
    %497 = vmatpush1.bf16.msra.mxu0 %v462
    %498 = vmatprep.subr.bf16.mxu0 0
    %499 = vmatpush1.bf16.msra.mxu0 %v461
    %500 = vmatprep.subr.bf16.mxu0 0
    %501 = vmatpush1.bf16.msra.mxu0 %v460
    %502 = vmatprep.subr.bf16.mxu0 0
    %503 = vmatpush1.bf16.msra.mxu0 %v459
    %504 = vmatprep.subr.bf16.mxu0 0
    %505 = vmatpush1.bf16.msra.mxu0 %v458
    %506 = vmatprep.subr.bf16.mxu0 0
    %507 = vmatpush2.bf16.msra.mxu0 %v473
    %508 = vmatprep.subr.bf16.mxu0 0
    %509 = vmatpush2.bf16.msra.mxu0 %v472
    %510 = vmatprep.subr.bf16.mxu0 0
    %511 = vmatpush2.bf16.msra.mxu0 %v471
    %512 = vmatprep.subr.bf16.mxu0 0
    %513 = vmatpush2.bf16.msra.mxu0 %v470
    %514 = vmatprep.subr.bf16.mxu0 0
    %515 = vmatpush2.bf16.msra.mxu0 %v469
    %516 = vmatprep.subr.bf16.mxu0 0
    %517 = vmatpush2.bf16.msra.mxu0 %v468
    %518 = vmatprep.subr.bf16.mxu0 0
    %519 = vmatpush2.bf16.msra.mxu0 %v467
    %520 = vmatprep.subr.bf16.mxu0 0
    %521 = vmatpush2.bf16.msra.mxu0 %v466
    %522 = vmatprep.mubr.bf16.mxu0 %v354
    %523 = vmatmul.mubr.bf16.gmra.mxu0 %v353
    %v524 = vpop.f32.mrf.mxu0
    %v525 = vadd.f32 %v392, %v524
    %v526 = vpop.f32.mrf.mxu0
    %v527 = vpop.f32.mrf.mxu0
    %v528 = vpop.f32.mrf.mxu0
    %529 = vdwg.mxu0
    %vm530 = vcmp.lt.s32.totalorder %v317, 10
    %v531 = vsel %vm530, %v525, -inf
    %532 = vmax.xlane.f32.xlu0 %v531
    %v533 = vpop.xlane.xlu0 %532
    %v534 = vsub.f32 %v531, %v533
    %v535 = vmul.f32 %v534, 1.442695
    %v536 = vpow.pop %v535
    %537 = vadd.xlane.f32.xlu0 %v536
    %v538 = vpop.xlane.xlu0 %537
    %v539 = vlog2.pop %v538
    %v540 = vmul.f32 %v539, 0.6931472
    %v541 = vsub.f32 %v534, %v540
    %542 = vst [vmem:[#allocation10] sm:$0xff] %v541
    // Predicated region
    $region34: #{tpu_custom_call.1} parent=1 // pred_check
      _
    $region35: #{tpu_custom_call.1} parent=1 // pred_check_branch
      %544 = sbr.rel (0) target = $region37
    $region36: #{tpu_custom_call.1} parent=1 // pred_region
      %s546 = ssub.s32 128, 128
      %547 = vsyncadd [#allocation6], %s546
      %s549 = sshll.u32 [#allocation10], 4
      %s550 = int_to_ptr.vmem [resolvable:$true] %s549
      %552 = dma.vmem_to_hbm [thread:$0]  %s550, 128, %s6, [#allocation6]
    $region37: #{tpu_custom_call.1} parent=1 // pred_fallthru
      _
    // Predicated region
    $region38: #{tpu_custom_call.1} parent=1 // pred_check
      _
    $region39: #{tpu_custom_call.1} parent=1 // pred_check_branch
      %554 = sbr.rel (0) target = $region41
    $region40: #{tpu_custom_call.1} parent=1 // pred_region
      %555 = dma.done [#allocation6], 128
    $region41: #{tpu_custom_call.1} parent=1 // pred_fallthru
      _
    %556 = vsyncpa [#allocation5], 1
    %557 = vsyncpa [#allocation8], 1
    %558 = vsyncpa [#allocation6], 1

</llo_original>
